<compile_context>
chip_gen: v6e
topology: v6e:2x2x1
jax: 0.10.0
libtpu: 0.0.40
codegen_flags: <defaults>
</compile_context>

<pallas_src>
import jax
import jax.numpy as jnp
from jax import lax
from jax.experimental import pallas as pl
from jax.experimental.pallas import tpu as pltpu

BN_EPS = 1e-5        # torch.nn.BatchNorm1d default eps
NORM_EPS = 1e-12     # torch.nn.functional.normalize default eps


def _vmem_spec():
    return pl.BlockSpec(memory_space=pltpu.MemorySpace.VMEM)


# -------------------- fused Pallas kernel --------------------

def _make_byol_kernel(half_batch):
    """Fused BYOL forward kernel. `half_batch` = per-view batch size B; all batched
    activations carry 2*B rows (view-1 rows [0:B], view-2 rows [B:2B])."""
    B = half_batch

    def two_view_mlp(x, w1, b1, gamma, beta, w2, b2):
        # Linear -> BatchNorm1d (train mode, *per-view* biased batch stats) -> ReLU -> Linear
        # bf16 MXU operands, f32 accumulation; BN / activation math in f32.
        h = jnp.dot(x.astype(jnp.bfloat16), w1,
                    preferred_element_type=jnp.float32) + b1            # [2B, Hd] f32
        h1, h2 = h[:B], h[B:]                                           # static per-view slices
        mu1 = jnp.mean(h1, axis=0, keepdims=True)                       # [1, Hd]
        mu2 = jnp.mean(h2, axis=0, keepdims=True)
        d1, d2 = h1 - mu1, h2 - mu2
        v1 = jnp.mean(d1 * d1, axis=0, keepdims=True)                   # biased variance
        v2 = jnp.mean(d2 * d2, axis=0, keepdims=True)
        n1 = d1 * lax.rsqrt(v1 + BN_EPS)
        n2 = d2 * lax.rsqrt(v2 + BN_EPS)
        hn = jnp.concatenate([n1, n2], axis=0)                          # [2B, Hd]
        hn = jnp.maximum(hn * gamma + beta, 0.0)
        return jnp.dot(hn.astype(jnp.bfloat16), w2,
                       preferred_element_type=jnp.float32) + b2         # [2B, Dout] f32

    def normalize(v):
        # F.normalize(p=2, eps=1e-12): v / max(||v||, eps) == v * rsqrt(max(||v||^2, eps^2))
        ss = jnp.sum(v * v, axis=-1, keepdims=True)
        return v * lax.rsqrt(jnp.maximum(ss, NORM_EPS * NORM_EPS))

    def kernel(patch_ref, cw_ref, cb_ref, pool_ref,
               pj_w1, pj_b1, pj_g, pj_bt, pj_w2, pj_b2,
               pr_w1, pr_b1, pr_g, pr_bt, pr_w2, pr_b2,
               loss_ref):
        # ---- backbone: 3x3 s2 p1 conv as a flat 2D im2col matmul (bf16 MXU) + bias + ReLU
        y = jnp.dot(patch_ref[...], cw_ref[...],
                    preferred_element_type=jnp.float32)                 # [2B*P, C] f32
        y = jnp.maximum(y + cb_ref[...], 0.0)
        # global average pool as an MXU contraction with a block-diagonal (1/P) matrix.
        rep = jnp.dot(pool_ref[...], y,
                      preferred_element_type=jnp.float32)               # [2B, C]

        # ---- projector (online encoder). Target encoder == deepcopy(online), zero EMA
        #      steps taken, so these are also the target projections.
        proj = two_view_mlp(rep, pj_w1[...], pj_b1[...], pj_g[...], pj_bt[...],
                            pj_w2[...], pj_b2[...])                     # [2B, D]

        # ---- online predictor
        pred = two_view_mlp(proj, pr_w1[...], pr_b1[...], pr_g[...], pr_bt[...],
                            pr_w2[...], pr_b2[...])                     # [2B, D]

        # ---- BYOL loss: cross-paired 2 - 2*cos, summed over views, mean over batch.
        tgt = lax.stop_gradient(proj)                                   # detach target branch
        pn = normalize(pred)
        tn = normalize(tgt)
        l1 = 2.0 - 2.0 * jnp.sum(pn[:B] * tn[B:], axis=-1, keepdims=True)   # [B, 1]
        l2 = 2.0 - 2.0 * jnp.sum(pn[B:] * tn[:B], axis=-1, keepdims=True)   # [B, 1]
        loss_ref[...] = jnp.mean(l1 + l2, keepdims=True)                    # (1, 1)

    return kernel


# -------------------- wrapper glue (plain JAX) --------------------

def _im2col_3x3_s2(x_nhwc, k_pad):
    """im2col for a 3x3 / stride-2 / pad-1 conv -> flat [B*Ho*Wo, k_pad] (K zero-padded)."""
    B, H, W, Cin = x_nhwc.shape
    Ho, Wo = H // 2, W // 2
    xp = jnp.pad(x_nhwc, ((0, 0), (1, 1), (1, 1), (0, 0)))
    cols = []
    for kh in range(3):
        for kw in range(3):
            cols.append(lax.slice(xp,
                                  (0, kh, kw, 0),
                                  (B, kh + 2 * (Ho - 1) + 1, kw + 2 * (Wo - 1) + 1, Cin),
                                  (1, 2, 2, 1)))
    patches = jnp.stack(cols, axis=3).reshape(B * Ho * Wo, 9 * Cin)   # (kh,kw,cin) contraction order
    if k_pad > 9 * Cin:
        patches = jnp.pad(patches, ((0, 0), (0, k_pad - 9 * Cin)))
    return patches


def byol_forward(x_nchw, params):
    x = jnp.transpose(x_nchw, (0, 2, 3, 1)).astype(jnp.float32)   # NCHW -> NHWC
    img1 = x                                                       # augment1 (identity)
    img2 = x[:, :, ::-1, :]                                        # augment2 (horizontal flip)
    imgs = jnp.concatenate([img1, img2], axis=0)                   # [2B, H, W, Cin]

    online = params["online"]
    pred_p = params["pred"]
    # params["target"] is intentionally unused: it is an exact deepcopy of params["online"]
    # (no EMA update in this forward), so target projections == online projections.

    conv_w = online["conv_w"]
    kh, kw, cin, cout = conv_w.shape
    k_raw = kh * kw * cin
    k_pad = ((k_raw + 7) // 8) * 8                                 # 27 -> 32 (sublane aligned)

    half_batch = x_nchw.shape[0]
    B2, H, W, _ = imgs.shape
    P = (H // 2) * (W // 2)

    # bf16 MXU operands (f32 accumulation inside the kernel).
    patches = _im2col_3x3_s2(imgs, k_pad).astype(jnp.bfloat16)     # [2B*P, k_pad]
    w_flat = jnp.pad(conv_w.reshape(k_raw, cout),
                     ((0, k_pad - k_raw), (0, 0))).astype(jnp.bfloat16)   # [k_pad, C]
    b_flat = online["conv_b"].reshape(1, cout)
    # block-diagonal (1/P) pooling matrix: GAP as an MXU contraction.
    pool = jnp.kron(jnp.eye(B2, dtype=jnp.float32),
                    jnp.full((1, P), 1.0 / P, jnp.float32))        # [2B, 2B*P]

    proj = online["proj"]
    bf16 = lambda a: a.astype(jnp.bfloat16)
    kernel = _make_byol_kernel(half_batch)

    loss = pl.pallas_call(
        kernel,
        out_shape=jax.ShapeDtypeStruct((1, 1), jnp.float32),
        in_specs=[_vmem_spec() for _ in range(16)],
        out_specs=_vmem_spec(),
    )(patches, w_flat, b_flat, pool,
      bf16(proj["w1"]), proj["b1"], proj["gamma"], proj["beta"],
      bf16(proj["w2"]), proj["b2"],
      bf16(pred_p["w1"]), pred_p["b1"], pred_p["gamma"], pred_p["beta"],
      bf16(pred_p["w2"]), pred_p["b2"])
    return loss[0, 0]


# -------------------- deterministic parameter init --------------------

def init_mlp(key, d_in, d_hidden, d_out):
    k1, k2, k3, k4, k5, k6 = jax.random.split(key, 6)
    return dict(
        w1=0.1 * jax.random.normal(k1, (d_in, d_hidden), jnp.float32),
        b1=0.1 * jax.random.normal(k2, (1, d_hidden), jnp.float32),
        gamma=1.0 + 0.1 * jax.random.normal(k3, (1, d_hidden), jnp.float32),
        beta=0.1 * jax.random.normal(k4, (1, d_hidden), jnp.float32),
        w2=0.1 * jax.random.normal(k5, (d_hidden, d_out), jnp.float32),
        b2=0.1 * jax.random.normal(k6, (1, d_out), jnp.float32),
    )


def init_params(key, c_in, c_out, proj_size, proj_hidden):
    k_conv_w, k_conv_b, k_proj, k_pred = jax.random.split(key, 4)
    online = dict(
        conv_w=0.1 * jax.random.normal(k_conv_w, (3, 3, c_in, c_out), jnp.float32),
        conv_b=0.1 * jax.random.normal(k_conv_b, (c_out,), jnp.float32),
        proj=init_mlp(k_proj, c_out, proj_hidden, proj_size),
    )
    target = jax.tree_util.tree_map(lambda a: a.copy(), online)   # deepcopy(online_encoder)
    pred = init_mlp(k_pred, proj_size, proj_hidden, proj_size)
    return dict(online=online, target=target, pred=pred)


if __name__ == "__main__":
    B, C_IN, H, W = 2, 3, 16, 16            # image_size=16, 3-channel images, batch=2
    C_OUT = 32                              # backbone feature / representation dim
    PROJ_SIZE, PROJ_HIDDEN = 32, 128        # projection_size, projection_hidden_size (small)

    key = jax.random.PRNGKey(0)
    k_x, k_params = jax.random.split(key)
    x = jax.random.normal(k_x, (B, C_IN, H, W), jnp.float32)
    params = init_params(k_params, C_IN, C_OUT, PROJ_SIZE, PROJ_HIDDEN)

    loss = jax.jit(byol_forward)(x, params)
    jax.block_until_ready(loss)
    assert loss.shape == () and loss.dtype == jnp.float32
    print("KERNEL_OK")
</pallas_src>

<mosaic_0001>
module attributes {stable_mosaic.version = 11 : i64} {
  func.func @kernel(%arg0: memref<256x32xbf16, #tpu.memory_space<vmem>>, %arg1: memref<32x32xbf16, #tpu.memory_space<vmem>>, %arg2: memref<1x32xf32, #tpu.memory_space<vmem>>, %arg3: memref<4x256xf32, #tpu.memory_space<vmem>>, %arg4: memref<32x128xbf16, #tpu.memory_space<vmem>>, %arg5: memref<1x128xf32, #tpu.memory_space<vmem>>, %arg6: memref<1x128xf32, #tpu.memory_space<vmem>>, %arg7: memref<1x128xf32, #tpu.memory_space<vmem>>, %arg8: memref<128x32xbf16, #tpu.memory_space<vmem>>, %arg9: memref<1x32xf32, #tpu.memory_space<vmem>>, %arg10: memref<32x128xbf16, #tpu.memory_space<vmem>>, %arg11: memref<1x128xf32, #tpu.memory_space<vmem>>, %arg12: memref<1x128xf32, #tpu.memory_space<vmem>>, %arg13: memref<1x128xf32, #tpu.memory_space<vmem>>, %arg14: memref<128x32xbf16, #tpu.memory_space<vmem>>, %arg15: memref<1x32xf32, #tpu.memory_space<vmem>>, %arg16: memref<1x1xf32, #tpu.memory_space<vmem>>) attributes {dimension_semantics = [], scalar_prefetch = 0 : i64, scratch_operands = 0 : i64, tpu.core_type = #tpu.core_type<tc>} {
    %c0 = arith.constant 0 : index
    %c0_0 = arith.constant 0 : index
    %0 = vector.load %arg0[%c0, %c0_0] : memref<256x32xbf16, #tpu.memory_space<vmem>>, vector<256x32xbf16>
    %c0_1 = arith.constant 0 : index
    %c0_2 = arith.constant 0 : index
    %1 = vector.load %arg1[%c0_1, %c0_2] : memref<32x32xbf16, #tpu.memory_space<vmem>>, vector<32x32xbf16>
    %cst = arith.constant dense<0.000000e+00> : vector<256x32xf32>
    %2 = tpu.matmul %0, %1, %cst {dimension_numbers = #tpu.dot_dimension_numbers<[1], [0], [0], [1], [0, 0, 1, 1], [], []>} : vector<256x32xbf16>, vector<32x32xbf16>, vector<256x32xf32> -> vector<256x32xf32>
    %c0_3 = arith.constant 0 : index
    %c0_4 = arith.constant 0 : index
    %3 = vector.load %arg2[%c0_3, %c0_4] : memref<1x32xf32, #tpu.memory_space<vmem>>, vector<1x32xf32>
    %4 = vector.broadcast %3 : vector<1x32xf32> to vector<256x32xf32>
    %5 = arith.addf %2, %4 : vector<256x32xf32>
    %cst_5 = arith.constant 0.000000e+00 : f32
    %6 = vector.broadcast %cst_5 : f32 to vector<256x32xf32>
    %7 = arith.maximumf %5, %6 : vector<256x32xf32>
    %c0_6 = arith.constant 0 : index
    %c0_7 = arith.constant 0 : index
    %8 = vector.load %arg3[%c0_6, %c0_7] : memref<4x256xf32, #tpu.memory_space<vmem>>, vector<4x256xf32>
    %cst_8 = arith.constant dense<0.000000e+00> : vector<4x32xf32>
    %9 = tpu.matmul %8, %7, %cst_8 {dimension_numbers = #tpu.dot_dimension_numbers<[1], [0], [0], [1], [0, 0, 1, 1], [], []>} : vector<4x256xf32>, vector<256x32xf32>, vector<4x32xf32> -> vector<4x32xf32>
    %c0_9 = arith.constant 0 : index
    %c0_10 = arith.constant 0 : index
    %10 = vector.load %arg4[%c0_9, %c0_10] : memref<32x128xbf16, #tpu.memory_space<vmem>>, vector<32x128xbf16>
    %c0_11 = arith.constant 0 : index
    %c0_12 = arith.constant 0 : index
    %11 = vector.load %arg5[%c0_11, %c0_12] : memref<1x128xf32, #tpu.memory_space<vmem>>, vector<1x128xf32>
    %c0_13 = arith.constant 0 : index
    %c0_14 = arith.constant 0 : index
    %12 = vector.load %arg6[%c0_13, %c0_14] : memref<1x128xf32, #tpu.memory_space<vmem>>, vector<1x128xf32>
    %c0_15 = arith.constant 0 : index
    %c0_16 = arith.constant 0 : index
    %13 = vector.load %arg7[%c0_15, %c0_16] : memref<1x128xf32, #tpu.memory_space<vmem>>, vector<1x128xf32>
    %c0_17 = arith.constant 0 : index
    %c0_18 = arith.constant 0 : index
    %14 = vector.load %arg8[%c0_17, %c0_18] : memref<128x32xbf16, #tpu.memory_space<vmem>>, vector<128x32xbf16>
    %c0_19 = arith.constant 0 : index
    %c0_20 = arith.constant 0 : index
    %15 = vector.load %arg9[%c0_19, %c0_20] : memref<1x32xf32, #tpu.memory_space<vmem>>, vector<1x32xf32>
    %16 = arith.truncf %9 : vector<4x32xf32> to vector<4x32xbf16>
    %cst_21 = arith.constant dense<0.000000e+00> : vector<4x128xf32>
    %17 = tpu.matmul %16, %10, %cst_21 {dimension_numbers = #tpu.dot_dimension_numbers<[1], [0], [0], [1], [0, 0, 1, 1], [], []>} : vector<4x32xbf16>, vector<32x128xbf16>, vector<4x128xf32> -> vector<4x128xf32>
    %18 = vector.broadcast %11 : vector<1x128xf32> to vector<4x128xf32>
    %19 = arith.addf %17, %18 : vector<4x128xf32>
    %20 = vector.extract_strided_slice %19 {offsets = [0, 0], sizes = [2, 128], strides = [1, 1]} : vector<4x128xf32> to vector<2x128xf32>
    %21 = vector.extract_strided_slice %19 {offsets = [2, 0], sizes = [2, 128], strides = [1, 1]} : vector<4x128xf32> to vector<2x128xf32>
    %cst_22 = arith.constant dense<0.000000e+00> : vector<128xf32>
    %22 = vector.multi_reduction <add>, %20, %cst_22 [0] : vector<2x128xf32> to vector<128xf32>
    %23 = vector.shape_cast %22 : vector<128xf32> to vector<1x128xf32>
    %cst_23 = arith.constant 2.000000e+00 : f32
    %24 = vector.broadcast %cst_23 : f32 to vector<1x128xf32>
    %25 = arith.divf %23, %24 : vector<1x128xf32>
    %cst_24 = arith.constant dense<0.000000e+00> : vector<128xf32>
    %26 = vector.multi_reduction <add>, %21, %cst_24 [0] : vector<2x128xf32> to vector<128xf32>
    %27 = vector.shape_cast %26 : vector<128xf32> to vector<1x128xf32>
    %cst_25 = arith.constant 2.000000e+00 : f32
    %28 = vector.broadcast %cst_25 : f32 to vector<1x128xf32>
    %29 = arith.divf %27, %28 : vector<1x128xf32>
    %30 = vector.broadcast %25 : vector<1x128xf32> to vector<2x128xf32>
    %31 = arith.subf %20, %30 : vector<2x128xf32>
    %32 = vector.broadcast %29 : vector<1x128xf32> to vector<2x128xf32>
    %33 = arith.subf %21, %32 : vector<2x128xf32>
    %34 = arith.mulf %31, %31 : vector<2x128xf32>
    %cst_26 = arith.constant dense<0.000000e+00> : vector<128xf32>
    %35 = vector.multi_reduction <add>, %34, %cst_26 [0] : vector<2x128xf32> to vector<128xf32>
    %36 = vector.shape_cast %35 : vector<128xf32> to vector<1x128xf32>
    %cst_27 = arith.constant 2.000000e+00 : f32
    %37 = vector.broadcast %cst_27 : f32 to vector<1x128xf32>
    %38 = arith.divf %36, %37 : vector<1x128xf32>
    %39 = arith.mulf %33, %33 : vector<2x128xf32>
    %cst_28 = arith.constant dense<0.000000e+00> : vector<128xf32>
    %40 = vector.multi_reduction <add>, %39, %cst_28 [0] : vector<2x128xf32> to vector<128xf32>
    %41 = vector.shape_cast %40 : vector<128xf32> to vector<1x128xf32>
    %cst_29 = arith.constant 2.000000e+00 : f32
    %42 = vector.broadcast %cst_29 : f32 to vector<1x128xf32>
    %43 = arith.divf %41, %42 : vector<1x128xf32>
    %cst_30 = arith.constant 9.99999974E-6 : f32
    %44 = vector.broadcast %cst_30 : f32 to vector<1x128xf32>
    %45 = arith.addf %38, %44 : vector<1x128xf32>
    %46 = math.rsqrt %45 : vector<1x128xf32>
    %47 = vector.broadcast %46 : vector<1x128xf32> to vector<2x128xf32>
    %48 = arith.mulf %31, %47 : vector<2x128xf32>
    %cst_31 = arith.constant 9.99999974E-6 : f32
    %49 = vector.broadcast %cst_31 : f32 to vector<1x128xf32>
    %50 = arith.addf %43, %49 : vector<1x128xf32>
    %51 = math.rsqrt %50 : vector<1x128xf32>
    %52 = vector.broadcast %51 : vector<1x128xf32> to vector<2x128xf32>
    %53 = arith.mulf %33, %52 : vector<2x128xf32>
    %54 = tpu.concatenate %48, %53 in 0 : vector<2x128xf32>, vector<2x128xf32> -> vector<4x128xf32>
    %55 = vector.broadcast %12 : vector<1x128xf32> to vector<4x128xf32>
    %56 = arith.mulf %54, %55 : vector<4x128xf32>
    %57 = vector.broadcast %13 : vector<1x128xf32> to vector<4x128xf32>
    %58 = arith.addf %56, %57 : vector<4x128xf32>
    %cst_32 = arith.constant 0.000000e+00 : f32
    %59 = vector.broadcast %cst_32 : f32 to vector<4x128xf32>
    %60 = arith.maximumf %58, %59 : vector<4x128xf32>
    %61 = arith.truncf %60 : vector<4x128xf32> to vector<4x128xbf16>
    %cst_33 = arith.constant dense<0.000000e+00> : vector<4x32xf32>
    %62 = tpu.matmul %61, %14, %cst_33 {dimension_numbers = #tpu.dot_dimension_numbers<[1], [0], [0], [1], [0, 0, 1, 1], [], []>} : vector<4x128xbf16>, vector<128x32xbf16>, vector<4x32xf32> -> vector<4x32xf32>
    %63 = vector.broadcast %15 : vector<1x32xf32> to vector<4x32xf32>
    %64 = arith.addf %62, %63 : vector<4x32xf32>
    %c0_34 = arith.constant 0 : index
    %c0_35 = arith.constant 0 : index
    %65 = vector.load %arg10[%c0_34, %c0_35] : memref<32x128xbf16, #tpu.memory_space<vmem>>, vector<32x128xbf16>
    %c0_36 = arith.constant 0 : index
    %c0_37 = arith.constant 0 : index
    %66 = vector.load %arg11[%c0_36, %c0_37] : memref<1x128xf32, #tpu.memory_space<vmem>>, vector<1x128xf32>
    %c0_38 = arith.constant 0 : index
    %c0_39 = arith.constant 0 : index
    %67 = vector.load %arg12[%c0_38, %c0_39] : memref<1x128xf32, #tpu.memory_space<vmem>>, vector<1x128xf32>
    %c0_40 = arith.constant 0 : index
    %c0_41 = arith.constant 0 : index
    %68 = vector.load %arg13[%c0_40, %c0_41] : memref<1x128xf32, #tpu.memory_space<vmem>>, vector<1x128xf32>
    %c0_42 = arith.constant 0 : index
    %c0_43 = arith.constant 0 : index
    %69 = vector.load %arg14[%c0_42, %c0_43] : memref<128x32xbf16, #tpu.memory_space<vmem>>, vector<128x32xbf16>
    %c0_44 = arith.constant 0 : index
    %c0_45 = arith.constant 0 : index
    %70 = vector.load %arg15[%c0_44, %c0_45] : memref<1x32xf32, #tpu.memory_space<vmem>>, vector<1x32xf32>
    %71 = arith.truncf %64 : vector<4x32xf32> to vector<4x32xbf16>
    %cst_46 = arith.constant dense<0.000000e+00> : vector<4x128xf32>
    %72 = tpu.matmul %71, %65, %cst_46 {dimension_numbers = #tpu.dot_dimension_numbers<[1], [0], [0], [1], [0, 0, 1, 1], [], []>} : vector<4x32xbf16>, vector<32x128xbf16>, vector<4x128xf32> -> vector<4x128xf32>
    %73 = vector.broadcast %66 : vector<1x128xf32> to vector<4x128xf32>
    %74 = arith.addf %72, %73 : vector<4x128xf32>
    %75 = vector.extract_strided_slice %74 {offsets = [0, 0], sizes = [2, 128], strides = [1, 1]} : vector<4x128xf32> to vector<2x128xf32>
    %76 = vector.extract_strided_slice %74 {offsets = [2, 0], sizes = [2, 128], strides = [1, 1]} : vector<4x128xf32> to vector<2x128xf32>
    %cst_47 = arith.constant dense<0.000000e+00> : vector<128xf32>
    %77 = vector.multi_reduction <add>, %75, %cst_47 [0] : vector<2x128xf32> to vector<128xf32>
    %78 = vector.shape_cast %77 : vector<128xf32> to vector<1x128xf32>
    %cst_48 = arith.constant 2.000000e+00 : f32
    %79 = vector.broadcast %cst_48 : f32 to vector<1x128xf32>
    %80 = arith.divf %78, %79 : vector<1x128xf32>
    %cst_49 = arith.constant dense<0.000000e+00> : vector<128xf32>
    %81 = vector.multi_reduction <add>, %76, %cst_49 [0] : vector<2x128xf32> to vector<128xf32>
    %82 = vector.shape_cast %81 : vector<128xf32> to vector<1x128xf32>
    %cst_50 = arith.constant 2.000000e+00 : f32
    %83 = vector.broadcast %cst_50 : f32 to vector<1x128xf32>
    %84 = arith.divf %82, %83 : vector<1x128xf32>
    %85 = vector.broadcast %80 : vector<1x128xf32> to vector<2x128xf32>
    %86 = arith.subf %75, %85 : vector<2x128xf32>
    %87 = vector.broadcast %84 : vector<1x128xf32> to vector<2x128xf32>
    %88 = arith.subf %76, %87 : vector<2x128xf32>
    %89 = arith.mulf %86, %86 : vector<2x128xf32>
    %cst_51 = arith.constant dense<0.000000e+00> : vector<128xf32>
    %90 = vector.multi_reduction <add>, %89, %cst_51 [0] : vector<2x128xf32> to vector<128xf32>
    %91 = vector.shape_cast %90 : vector<128xf32> to vector<1x128xf32>
    %cst_52 = arith.constant 2.000000e+00 : f32
    %92 = vector.broadcast %cst_52 : f32 to vector<1x128xf32>
    %93 = arith.divf %91, %92 : vector<1x128xf32>
    %94 = arith.mulf %88, %88 : vector<2x128xf32>
    %cst_53 = arith.constant dense<0.000000e+00> : vector<128xf32>
    %95 = vector.multi_reduction <add>, %94, %cst_53 [0] : vector<2x128xf32> to vector<128xf32>
    %96 = vector.shape_cast %95 : vector<128xf32> to vector<1x128xf32>
    %cst_54 = arith.constant 2.000000e+00 : f32
    %97 = vector.broadcast %cst_54 : f32 to vector<1x128xf32>
    %98 = arith.divf %96, %97 : vector<1x128xf32>
    %cst_55 = arith.constant 9.99999974E-6 : f32
    %99 = vector.broadcast %cst_55 : f32 to vector<1x128xf32>
    %100 = arith.addf %93, %99 : vector<1x128xf32>
    %101 = math.rsqrt %100 : vector<1x128xf32>
    %102 = vector.broadcast %101 : vector<1x128xf32> to vector<2x128xf32>
    %103 = arith.mulf %86, %102 : vector<2x128xf32>
    %cst_56 = arith.constant 9.99999974E-6 : f32
    %104 = vector.broadcast %cst_56 : f32 to vector<1x128xf32>
    %105 = arith.addf %98, %104 : vector<1x128xf32>
    %106 = math.rsqrt %105 : vector<1x128xf32>
    %107 = vector.broadcast %106 : vector<1x128xf32> to vector<2x128xf32>
    %108 = arith.mulf %88, %107 : vector<2x128xf32>
    %109 = tpu.concatenate %103, %108 in 0 : vector<2x128xf32>, vector<2x128xf32> -> vector<4x128xf32>
    %110 = vector.broadcast %67 : vector<1x128xf32> to vector<4x128xf32>
    %111 = arith.mulf %109, %110 : vector<4x128xf32>
    %112 = vector.broadcast %68 : vector<1x128xf32> to vector<4x128xf32>
    %113 = arith.addf %111, %112 : vector<4x128xf32>
    %cst_57 = arith.constant 0.000000e+00 : f32
    %114 = vector.broadcast %cst_57 : f32 to vector<4x128xf32>
    %115 = arith.maximumf %113, %114 : vector<4x128xf32>
    %116 = arith.truncf %115 : vector<4x128xf32> to vector<4x128xbf16>
    %cst_58 = arith.constant dense<0.000000e+00> : vector<4x32xf32>
    %117 = tpu.matmul %116, %69, %cst_58 {dimension_numbers = #tpu.dot_dimension_numbers<[1], [0], [0], [1], [0, 0, 1, 1], [], []>} : vector<4x128xbf16>, vector<128x32xbf16>, vector<4x32xf32> -> vector<4x32xf32>
    %118 = vector.broadcast %70 : vector<1x32xf32> to vector<4x32xf32>
    %119 = arith.addf %117, %118 : vector<4x32xf32>
    %120 = arith.mulf %119, %119 : vector<4x32xf32>
    %cst_59 = arith.constant dense<0.000000e+00> : vector<4xf32>
    %121 = vector.multi_reduction <add>, %120, %cst_59 [1] : vector<4x32xf32> to vector<4xf32>
    %122 = vector.shape_cast %121 : vector<4xf32> to vector<4x1xf32>
    %cst_60 = arith.constant 1.000000e-24 : f32
    %123 = vector.broadcast %cst_60 : f32 to vector<4x1xf32>
    %124 = arith.maximumf %122, %123 : vector<4x1xf32>
    %125 = math.rsqrt %124 : vector<4x1xf32>
    %126 = vector.broadcast %125 : vector<4x1xf32> to vector<4x32xf32>
    %127 = arith.mulf %119, %126 : vector<4x32xf32>
    %128 = arith.mulf %64, %64 : vector<4x32xf32>
    %cst_61 = arith.constant dense<0.000000e+00> : vector<4xf32>
    %129 = vector.multi_reduction <add>, %128, %cst_61 [1] : vector<4x32xf32> to vector<4xf32>
    %130 = vector.shape_cast %129 : vector<4xf32> to vector<4x1xf32>
    %cst_62 = arith.constant 1.000000e-24 : f32
    %131 = vector.broadcast %cst_62 : f32 to vector<4x1xf32>
    %132 = arith.maximumf %130, %131 : vector<4x1xf32>
    %133 = math.rsqrt %132 : vector<4x1xf32>
    %134 = vector.broadcast %133 : vector<4x1xf32> to vector<4x32xf32>
    %135 = arith.mulf %64, %134 : vector<4x32xf32>
    %136 = vector.extract_strided_slice %127 {offsets = [0, 0], sizes = [2, 32], strides = [1, 1]} : vector<4x32xf32> to vector<2x32xf32>
    %137 = vector.extract_strided_slice %135 {offsets = [2, 0], sizes = [2, 32], strides = [1, 1]} : vector<4x32xf32> to vector<2x32xf32>
    %138 = arith.mulf %136, %137 : vector<2x32xf32>
    %cst_63 = arith.constant dense<0.000000e+00> : vector<2xf32>
    %139 = vector.multi_reduction <add>, %138, %cst_63 [1] : vector<2x32xf32> to vector<2xf32>
    %140 = vector.shape_cast %139 : vector<2xf32> to vector<2x1xf32>
    %cst_64 = arith.constant 2.000000e+00 : f32
    %141 = vector.broadcast %cst_64 : f32 to vector<2x1xf32>
    %142 = arith.mulf %141, %140 : vector<2x1xf32>
    %cst_65 = arith.constant 2.000000e+00 : f32
    %143 = vector.broadcast %cst_65 : f32 to vector<2x1xf32>
    %144 = arith.subf %143, %142 : vector<2x1xf32>
    %145 = vector.extract_strided_slice %127 {offsets = [2, 0], sizes = [2, 32], strides = [1, 1]} : vector<4x32xf32> to vector<2x32xf32>
    %146 = vector.extract_strided_slice %135 {offsets = [0, 0], sizes = [2, 32], strides = [1, 1]} : vector<4x32xf32> to vector<2x32xf32>
    %147 = arith.mulf %145, %146 : vector<2x32xf32>
    %cst_66 = arith.constant dense<0.000000e+00> : vector<2xf32>
    %148 = vector.multi_reduction <add>, %147, %cst_66 [1] : vector<2x32xf32> to vector<2xf32>
    %149 = vector.shape_cast %148 : vector<2xf32> to vector<2x1xf32>
    %cst_67 = arith.constant 2.000000e+00 : f32
    %150 = vector.broadcast %cst_67 : f32 to vector<2x1xf32>
    %151 = arith.mulf %150, %149 : vector<2x1xf32>
    %cst_68 = arith.constant 2.000000e+00 : f32
    %152 = vector.broadcast %cst_68 : f32 to vector<2x1xf32>
    %153 = arith.subf %152, %151 : vector<2x1xf32>
    %154 = arith.addf %144, %153 : vector<2x1xf32>
    %155 = vector.shape_cast %154 : vector<2x1xf32> to vector<1x2x1xf32>
    %cst_69 = arith.constant dense<0.000000e+00> : vector<1xf32>
    %156 = vector.multi_reduction <add>, %155, %cst_69 [1, 2] : vector<1x2x1xf32> to vector<1xf32>
    %157 = vector.shape_cast %156 : vector<1xf32> to vector<1x1x1xf32>
    %158 = vector.extract %157[0, 0, 0] : f32 from vector<1x1x1xf32>
    %159 = vector.broadcast %158 : f32 to vector<1x1xf32>
    %cst_70 = arith.constant 2.000000e+00 : f32
    %160 = vector.broadcast %cst_70 : f32 to vector<1x1xf32>
    %161 = arith.divf %159, %160 : vector<1x1xf32>
    %c0_71 = arith.constant 0 : index
    %c0_72 = arith.constant 0 : index
    %162 = vector.load %arg16[%c0_71, %c0_72] : memref<1x1xf32, #tpu.memory_space<vmem>>, vector<1x1xf32>
    tpu.vector_store %arg16[%c0_71, %c0_72], %161 {strides = array<i32>} : memref<1x1xf32, #tpu.memory_space<vmem>>, vector<1x1xf32>,
    return
  }
}

</mosaic_0001>

<llo_original>
// kernel: byol_forward.1
$region0: #{byol_forward.1}
  #allocation0 [shape = 'u32[]', space=smem, size = 0x4, offset = 0x4, fixed_abs, tag = 'smem constant byte address 0x4 - core index']
  #allocation1 [shape = 'u32[144,128]{1,0:T(1,128)}', space=vmem, size = 0x12000, scoped, tag = 'internal scratch']
  %s0 = inlined_call_operand.vmem [shape: bf16[256,32], index: 0, kind: input, shape index: {}]
  %s1 = inlined_call_operand.vmem [shape: bf16[32,32], index: 1, kind: input, shape index: {}]
  %s2 = inlined_call_operand.vmem [shape: f32[1,32], index: 2, kind: input, shape index: {}]
  %s3 = inlined_call_operand.vmem [shape: f32[4,256], index: 3, kind: input, shape index: {}]
  %s4 = inlined_call_operand.vmem [shape: bf16[32,128], index: 4, kind: input, shape index: {}]
  %s5 = inlined_call_operand.vmem [shape: f32[1,128], index: 5, kind: input, shape index: {}]
  %s6 = inlined_call_operand.vmem [shape: f32[1,128], index: 6, kind: input, shape index: {}]
  %s7 = inlined_call_operand.vmem [shape: f32[1,128], index: 7, kind: input, shape index: {}]
  %s8 = inlined_call_operand.vmem [shape: bf16[128,32], index: 8, kind: input, shape index: {}]
  %s9 = inlined_call_operand.vmem [shape: f32[1,32], index: 9, kind: input, shape index: {}]
  %s10 = inlined_call_operand.vmem [shape: bf16[32,128], index: 10, kind: input, shape index: {}]
  %s11 = inlined_call_operand.vmem [shape: f32[1,128], index: 11, kind: input, shape index: {}]
  %s12 = inlined_call_operand.vmem [shape: f32[1,128], index: 12, kind: input, shape index: {}]
  %s13 = inlined_call_operand.vmem [shape: f32[1,128], index: 13, kind: input, shape index: {}]
  %s14 = inlined_call_operand.vmem [shape: bf16[128,32], index: 14, kind: input, shape index: {}]
  %s15 = inlined_call_operand.vmem [shape: f32[1,32], index: 15, kind: input, shape index: {}]
  %s16 = inlined_call_operand.hbm [shape: f32[1,1], index: 16, kind: output, shape index: {}]
  %s17 = sld [smem:[#allocation0]]
  $region74: #{byol_forward.1} parent=0
    _
  %s19 = ssub.s32 1, %s17
  %s20 = scalar_select 0, %s19, %s17
  $region1: #{byol_forward.1} parent=0
    #allocation2 [shape = 'u8[512]{0}', space=vmem, size = 0x400, scoped, tag = 'output window, operand 0, single buffered']
    #allocation3 [shape = 's32[1]{0}', space=sflag, size = 0x4, scoped, tag = 'scoped memory for byol_forward.1']
    %21 = vsyncpa [#allocation3], 0
    // Predicated region
    $region2: #{byol_forward.1} parent=1 // pred_check
      _
    $region3: #{byol_forward.1} parent=1 // pred_check_branch
      %23 = sbr.rel (0) target = $region5
    $region4: #{byol_forward.1} parent=1 // pred_region
      _
    $region5: #{byol_forward.1} parent=1 // pred_fallthru
      _
    // Predicated region
    $region6: #{byol_forward.1} parent=1 // pred_check
      _
    $region7: #{byol_forward.1} parent=1 // pred_check_branch
      %25 = sbr.rel (0) target = $region9
    $region8: #{byol_forward.1} parent=1 // pred_region
      _
    $region9: #{byol_forward.1} parent=1 // pred_fallthru
      _
    // Predicated region
    $region10: #{byol_forward.1} parent=1 // pred_check
      _
    $region11: #{byol_forward.1} parent=1 // pred_check_branch
      %27 = sbr.rel (0) target = $region13
    $region12: #{byol_forward.1} parent=1 // pred_region
      _
    $region13: #{byol_forward.1} parent=1 // pred_fallthru
      _
    // Predicated region
    $region14: #{byol_forward.1} parent=1 // pred_check
      _
    $region15: #{byol_forward.1} parent=1 // pred_check_branch
      %29 = sbr.rel (0) target = $region17
    $region16: #{byol_forward.1} parent=1 // pred_region
      _
    $region17: #{byol_forward.1} parent=1 // pred_fallthru
      _
    // Predicated region
    $region18: #{byol_forward.1} parent=1 // pred_check
      _
    $region19: #{byol_forward.1} parent=1 // pred_check_branch
      %31 = sbr.rel (0) target = $region21
    $region20: #{byol_forward.1} parent=1 // pred_region
      _
    $region21: #{byol_forward.1} parent=1 // pred_fallthru
      _
    // Predicated region
    $region22: #{byol_forward.1} parent=1 // pred_check
      _
    $region23: #{byol_forward.1} parent=1 // pred_check_branch
      %33 = sbr.rel (0) target = $region25
    $region24: #{byol_forward.1} parent=1 // pred_region
      _
    $region25: #{byol_forward.1} parent=1 // pred_fallthru
      _
    // Predicated region
    $region26: #{byol_forward.1} parent=1 // pred_check
      _
    $region27: #{byol_forward.1} parent=1 // pred_check_branch
      %35 = sbr.rel (0) target = $region29
    $region28: #{byol_forward.1} parent=1 // pred_region
      _
    $region29: #{byol_forward.1} parent=1 // pred_fallthru
      _
    // Predicated region
    $region30: #{byol_forward.1} parent=1 // pred_check
      _
    $region31: #{byol_forward.1} parent=1 // pred_check_branch
      %37 = sbr.rel (0) target = $region33
    $region32: #{byol_forward.1} parent=1 // pred_region
      _
    $region33: #{byol_forward.1} parent=1 // pred_fallthru
      _
    // Predicated region
    $region34: #{byol_forward.1} parent=1 // pred_check
      _
    $region35: #{byol_forward.1} parent=1 // pred_check_branch
      %39 = sbr.rel (0) target = $region37
    $region36: #{byol_forward.1} parent=1 // pred_region
      _
    $region37: #{byol_forward.1} parent=1 // pred_fallthru
      _
    // Predicated region
    $region38: #{byol_forward.1} parent=1 // pred_check
      _
    $region39: #{byol_forward.1} parent=1 // pred_check_branch
      %41 = sbr.rel (0) target = $region41
    $region40: #{byol_forward.1} parent=1 // pred_region
      _
    $region41: #{byol_forward.1} parent=1 // pred_fallthru
      _
    // Predicated region
    $region42: #{byol_forward.1} parent=1 // pred_check
      _
    $region43: #{byol_forward.1} parent=1 // pred_check_branch
      %43 = sbr.rel (0) target = $region45
    $region44: #{byol_forward.1} parent=1 // pred_region
      _
    $region45: #{byol_forward.1} parent=1 // pred_fallthru
      _
    // Predicated region
    $region46: #{byol_forward.1} parent=1 // pred_check
      _
    $region47: #{byol_forward.1} parent=1 // pred_check_branch
      %45 = sbr.rel (0) target = $region49
    $region48: #{byol_forward.1} parent=1 // pred_region
      _
    $region49: #{byol_forward.1} parent=1 // pred_fallthru
      _
    // Predicated region
    $region50: #{byol_forward.1} parent=1 // pred_check
      _
    $region51: #{byol_forward.1} parent=1 // pred_check_branch
      %47 = sbr.rel (0) target = $region53
    $region52: #{byol_forward.1} parent=1 // pred_region
      _
    $region53: #{byol_forward.1} parent=1 // pred_fallthru
      _
    // Predicated region
    $region54: #{byol_forward.1} parent=1 // pred_check
      _
    $region55: #{byol_forward.1} parent=1 // pred_check_branch
      %49 = sbr.rel (0) target = $region57
    $region56: #{byol_forward.1} parent=1 // pred_region
      _
    $region57: #{byol_forward.1} parent=1 // pred_fallthru
      _
    // Predicated region
    $region58: #{byol_forward.1} parent=1 // pred_check
      _
    $region59: #{byol_forward.1} parent=1 // pred_check_branch
      %51 = sbr.rel (0) target = $region61
    $region60: #{byol_forward.1} parent=1 // pred_region
      _
    $region61: #{byol_forward.1} parent=1 // pred_fallthru
      _
    // Predicated region
    $region62: #{byol_forward.1} parent=1 // pred_check
      _
    $region63: #{byol_forward.1} parent=1 // pred_check_branch
      %53 = sbr.rel (0) target = $region65
    $region64: #{byol_forward.1} parent=1 // pred_region
      _
    $region65: #{byol_forward.1} parent=1 // pred_fallthru
      _
    %v55 = vld [vmem:[%s0] sm:$0xf]
    %v56 = vld [vmem:[%s0 + $0x4] sm:$0xf]
    %v57 = vld [vmem:[%s0 + $0x8] sm:$0xf]
    %v58 = vld [vmem:[%s0 + $0xc] sm:$0xf]
    %v59 = vld [vmem:[%s0 + $0x10] sm:$0xf]
    %v60 = vld [vmem:[%s0 + $0x14] sm:$0xf]
    %v61 = vld [vmem:[%s0 + $0x18] sm:$0xf]
    %v62 = vld [vmem:[%s0 + $0x1c] sm:$0xf]
    %v63 = vld [vmem:[%s0 + $0x20] sm:$0xf]
    %v64 = vld [vmem:[%s0 + $0x24] sm:$0xf]
    %v65 = vld [vmem:[%s0 + $0x28] sm:$0xf]
    %v66 = vld [vmem:[%s0 + $0x2c] sm:$0xf]
    %v67 = vld [vmem:[%s0 + $0x30] sm:$0xf]
    %v68 = vld [vmem:[%s0 + $0x34] sm:$0xf]
    %v69 = vld [vmem:[%s0 + $0x38] sm:$0xf]
    %v70 = vld [vmem:[%s0 + $0x3c] sm:$0xf]
    %v71 = vld [vmem:[%s0 + $0x40] sm:$0xf]
    %v72 = vld [vmem:[%s0 + $0x44] sm:$0xf]
    %v73 = vld [vmem:[%s0 + $0x48] sm:$0xf]
    %v74 = vld [vmem:[%s0 + $0x4c] sm:$0xf]
    %v75 = vld [vmem:[%s0 + $0x50] sm:$0xf]
    %v76 = vld [vmem:[%s0 + $0x54] sm:$0xf]
    %v77 = vld [vmem:[%s0 + $0x58] sm:$0xf]
    %v78 = vld [vmem:[%s0 + $0x5c] sm:$0xf]
    %v79 = vld [vmem:[%s0 + $0x60] sm:$0xf]
    %v80 = vld [vmem:[%s0 + $0x64] sm:$0xf]
    %v81 = vld [vmem:[%s0 + $0x68] sm:$0xf]
    %v82 = vld [vmem:[%s0 + $0x6c] sm:$0xf]
    %v83 = vld [vmem:[%s0 + $0x70] sm:$0xf]
    %v84 = vld [vmem:[%s0 + $0x74] sm:$0xf]
    %v85 = vld [vmem:[%s0 + $0x78] sm:$0xf]
    %v86 = vld [vmem:[%s0 + $0x7c] sm:$0xf]
    %v87 = vld [vmem:[%s1] sm:$0xf]
    %v88 = vld [vmem:[%s1 + $0x4] sm:$0xf]
    %v89 = vld [vmem:[%s1 + $0x8] sm:$0xf]
    %v90 = vld [vmem:[%s1 + $0xc] sm:$0xf]
    %v91 = vld [vmem:[%s2] sm:$0x1]
    %v93 = vlaneseq
    %v94 = vshrl.u32 %v93, 7
    %v95 = vsub.s32 0, %v94
    %v96 = vrot.slane %v91, %v95
    %v130 = vunpack.c.l.b16 %v55
    %v131 = vunpack.c.l.b16 %v56
    %v132 = vunpack.c.l.b16 %v57
    %v133 = vunpack.c.l.b16 %v58
    %v134 = vunpack.c.l.b16 %v59
    %v135 = vunpack.c.l.b16 %v60
    %v136 = vunpack.c.l.b16 %v61
    %v137 = vunpack.c.l.b16 %v62
    %v138 = vunpack.c.l.b16 %v63
    %v139 = vunpack.c.l.b16 %v64
    %v140 = vunpack.c.l.b16 %v65
    %v141 = vunpack.c.l.b16 %v66
    %v142 = vunpack.c.l.b16 %v67
    %v143 = vunpack.c.l.b16 %v68
    %v144 = vunpack.c.l.b16 %v69
    %v145 = vunpack.c.l.b16 %v70
    %v146 = vunpack.c.l.b16 %v71
    %v147 = vunpack.c.l.b16 %v72
    %v148 = vunpack.c.l.b16 %v73
    %v149 = vunpack.c.l.b16 %v74
    %v150 = vunpack.c.l.b16 %v75
    %v151 = vunpack.c.l.b16 %v76
    %v152 = vunpack.c.l.b16 %v77
    %v153 = vunpack.c.l.b16 %v78
    %v154 = vunpack.c.l.b16 %v79
    %v155 = vunpack.c.l.b16 %v80
    %v156 = vunpack.c.l.b16 %v81
    %v157 = vunpack.c.l.b16 %v82
    %v158 = vunpack.c.l.b16 %v83
    %v159 = vunpack.c.l.b16 %v84
    %v160 = vunpack.c.l.b16 %v85
    %v161 = vunpack.c.l.b16 %v86
    %v162 = vpack.c.b16 %v131, %v130
    %v163 = vpack.c.b16 %v133, %v132
    %v164 = vpack.c.b16 %v135, %v134
    %v165 = vpack.c.b16 %v137, %v136
    %v166 = vpack.c.b16 %v139, %v138
    %v167 = vpack.c.b16 %v141, %v140
    %v168 = vpack.c.b16 %v143, %v142
    %v169 = vpack.c.b16 %v145, %v144
    %v170 = vpack.c.b16 %v147, %v146
    %v171 = vpack.c.b16 %v149, %v148
    %v172 = vpack.c.b16 %v151, %v150
    %v173 = vpack.c.b16 %v153, %v152
    %v174 = vpack.c.b16 %v155, %v154
    %v175 = vpack.c.b16 %v157, %v156
    %v176 = vpack.c.b16 %v159, %v158
    %v177 = vpack.c.b16 %v161, %v160
    %v182 = vunpack.c.l.b16 %v87
    %v183 = vunpack.c.l.b16 %v88
    %v184 = vunpack.c.l.b16 %v89
    %v185 = vunpack.c.l.b16 %v90
    %v186 = vpack.c.b16 %v183, %v182
    %v187 = vpack.c.b16 %v185, %v184
    %vm190 = vcmask 261120
    %v192 = vsel %vm190, %v162, 0
    %v195 = vsel %vm190, %v163, 0
    %v198 = vsel %vm190, %v164, 0
    %v201 = vsel %vm190, %v165, 0
    %v204 = vsel %vm190, %v166, 0
    %v207 = vsel %vm190, %v167, 0
    %v210 = vsel %vm190, %v168, 0
    %v213 = vsel %vm190, %v169, 0
    %v216 = vsel %vm190, %v170, 0
    %v219 = vsel %vm190, %v171, 0
    %v222 = vsel %vm190, %v172, 0
    %v225 = vsel %vm190, %v173, 0
    %v228 = vsel %vm190, %v174, 0
    %v231 = vsel %vm190, %v175, 0
    %v234 = vsel %vm190, %v176, 0
    %v237 = vsel %vm190, %v177, 0
    %239 = vmatprep.subr.bf16.mxu0 0
    %240 = vmatpush1.bf16.msra.mxu0 0
    %241 = vmatprep.subr.bf16.mxu0 0
    %242 = vmatpush1.bf16.msra.mxu0 0
    %243 = vmatprep.subr.bf16.mxu0 0
    %244 = vmatpush1.bf16.msra.mxu0 0
    %245 = vmatprep.subr.bf16.mxu0 0
    %246 = vmatpush1.bf16.msra.mxu0 0
    %247 = vmatprep.subr.bf16.mxu0 0
    %248 = vmatpush1.bf16.msra.mxu0 0
    %249 = vmatprep.subr.bf16.mxu0 0
    %250 = vmatpush1.bf16.msra.mxu0 0
    %251 = vmatprep.subr.bf16.mxu0 0
    %252 = vmatpush1.bf16.msra.mxu0 %v187
    %253 = vmatprep.subr.bf16.mxu0 0
    %254 = vmatpush1.bf16.msra.mxu0 %v186
    %255 = vmatprep.subr.bf16.mxu0 0
    %256 = vmatpush2.bf16.msra.mxu0 0
    %257 = vmatprep.subr.bf16.mxu0 0
    %258 = vmatpush2.bf16.msra.mxu0 0
    %259 = vmatprep.subr.bf16.mxu0 0
    %260 = vmatpush2.bf16.msra.mxu0 0
    %261 = vmatprep.subr.bf16.mxu0 0
    %262 = vmatpush2.bf16.msra.mxu0 0
    %263 = vmatprep.subr.bf16.mxu0 0
    %264 = vmatpush2.bf16.msra.mxu0 0
    %265 = vmatprep.subr.bf16.mxu0 0
    %266 = vmatpush2.bf16.msra.mxu0 0
    %267 = vmatprep.subr.bf16.mxu0 0
    %268 = vmatpush2.bf16.msra.mxu0 0
    %269 = vmatprep.subr.bf16.mxu0 0
    %270 = vmatpush2.bf16.msra.mxu0 0
    %271 = vmatprep.mubr.bf16.mxu0 0
    %272 = vmatmul.mubr.bf16.gmra.mxu0 %v192
    %v273 = vpop.f32.mrf.mxu0
    %v274 = vadd.f32 %v96, %v273
    %v275 = vpop.f32.mrf.mxu0
    %v276 = vpop.f32.mrf.mxu0
    %v277 = vadd.f32 %v96, %v276
    %v278 = vpop.f32.mrf.mxu0
    %279 = vmatprep.mubr.bf16.mxu0 0
    %280 = vmatmul.mubr.bf16.gmra.mxu0 %v195
    %v281 = vpop.f32.mrf.mxu0
    %v282 = vadd.f32 %v96, %v281
    %v283 = vpop.f32.mrf.mxu0
    %v284 = vpop.f32.mrf.mxu0
    %v285 = vadd.f32 %v96, %v284
    %v286 = vpop.f32.mrf.mxu0
    %287 = vmatprep.mubr.bf16.mxu0 0
    %288 = vmatmul.mubr.bf16.gmra.mxu0 %v198
    %v289 = vpop.f32.mrf.mxu0
    %v290 = vadd.f32 %v96, %v289
    %v291 = vpop.f32.mrf.mxu0
    %v292 = vpop.f32.mrf.mxu0
    %v293 = vadd.f32 %v96, %v292
    %v294 = vpop.f32.mrf.mxu0
    %295 = vmatprep.mubr.bf16.mxu0 0
    %296 = vmatmul.mubr.bf16.gmra.mxu0 %v201
    %v297 = vpop.f32.mrf.mxu0
    %v298 = vadd.f32 %v96, %v297
    %v299 = vpop.f32.mrf.mxu0
    %v300 = vpop.f32.mrf.mxu0
    %v301 = vadd.f32 %v96, %v300
    %v302 = vpop.f32.mrf.mxu0
    %303 = vmatprep.mubr.bf16.mxu0 0
    %304 = vmatmul.mubr.bf16.gmra.mxu0 %v204
    %v305 = vpop.f32.mrf.mxu0
    %v306 = vadd.f32 %v96, %v305
    %v307 = vpop.f32.mrf.mxu0
    %v308 = vpop.f32.mrf.mxu0
    %v309 = vadd.f32 %v96, %v308
    %v310 = vpop.f32.mrf.mxu0
    %311 = vmatprep.mubr.bf16.mxu0 0
    %312 = vmatmul.mubr.bf16.gmra.mxu0 %v207
    %v313 = vpop.f32.mrf.mxu0
    %v314 = vadd.f32 %v96, %v313
    %v315 = vpop.f32.mrf.mxu0
    %v316 = vpop.f32.mrf.mxu0
    %v317 = vadd.f32 %v96, %v316
    %v318 = vpop.f32.mrf.mxu0
    %319 = vmatprep.mubr.bf16.mxu0 0
    %320 = vmatmul.mubr.bf16.gmra.mxu0 %v210
    %v321 = vpop.f32.mrf.mxu0
    %v322 = vadd.f32 %v96, %v321
    %v323 = vpop.f32.mrf.mxu0
    %v324 = vpop.f32.mrf.mxu0
    %v325 = vadd.f32 %v96, %v324
    %v326 = vpop.f32.mrf.mxu0
    %327 = vmatprep.mubr.bf16.mxu0 0
    %328 = vmatmul.mubr.bf16.gmra.mxu0 %v213
    %v329 = vpop.f32.mrf.mxu0
    %v330 = vadd.f32 %v96, %v329
    %v331 = vpop.f32.mrf.mxu0
    %v332 = vpop.f32.mrf.mxu0
    %v333 = vadd.f32 %v96, %v332
    %v334 = vpop.f32.mrf.mxu0
    %335 = vmatprep.mubr.bf16.mxu0 0
    %336 = vmatmul.mubr.bf16.gmra.mxu0 %v216
    %v337 = vpop.f32.mrf.mxu0
    %v338 = vadd.f32 %v96, %v337
    %v339 = vpop.f32.mrf.mxu0
    %v340 = vpop.f32.mrf.mxu0
    %v341 = vadd.f32 %v96, %v340
    %v342 = vpop.f32.mrf.mxu0
    %343 = vmatprep.mubr.bf16.mxu0 0
    %344 = vmatmul.mubr.bf16.gmra.mxu0 %v219
    %v345 = vpop.f32.mrf.mxu0
    %v346 = vadd.f32 %v96, %v345
    %v347 = vpop.f32.mrf.mxu0
    %v348 = vpop.f32.mrf.mxu0
    %v349 = vadd.f32 %v96, %v348
    %v350 = vpop.f32.mrf.mxu0
    %351 = vmatprep.mubr.bf16.mxu0 0
    %352 = vmatmul.mubr.bf16.gmra.mxu0 %v222
    %v353 = vpop.f32.mrf.mxu0
    %v354 = vadd.f32 %v96, %v353
    %v355 = vpop.f32.mrf.mxu0
    %v356 = vpop.f32.mrf.mxu0
    %v357 = vadd.f32 %v96, %v356
    %v358 = vpop.f32.mrf.mxu0
    %359 = vmatprep.mubr.bf16.mxu0 0
    %360 = vmatmul.mubr.bf16.gmra.mxu0 %v225
    %v361 = vpop.f32.mrf.mxu0
    %v362 = vadd.f32 %v96, %v361
    %v363 = vpop.f32.mrf.mxu0
    %v364 = vpop.f32.mrf.mxu0
    %v365 = vadd.f32 %v96, %v364
    %v366 = vpop.f32.mrf.mxu0
    %367 = vmatprep.mubr.bf16.mxu0 0
    %368 = vmatmul.mubr.bf16.gmra.mxu0 %v228
    %v369 = vpop.f32.mrf.mxu0
    %v370 = vadd.f32 %v96, %v369
    %v371 = vpop.f32.mrf.mxu0
    %v372 = vpop.f32.mrf.mxu0
    %v373 = vadd.f32 %v96, %v372
    %v374 = vpop.f32.mrf.mxu0
    %375 = vmatprep.mubr.bf16.mxu0 0
    %376 = vmatmul.mubr.bf16.gmra.mxu0 %v231
    %v377 = vpop.f32.mrf.mxu0
    %v378 = vadd.f32 %v96, %v377
    %v379 = vpop.f32.mrf.mxu0
    %v380 = vpop.f32.mrf.mxu0
    %v381 = vadd.f32 %v96, %v380
    %v382 = vpop.f32.mrf.mxu0
    %383 = vmatprep.mubr.bf16.mxu0 0
    %384 = vmatmul.mubr.bf16.gmra.mxu0 %v234
    %v385 = vpop.f32.mrf.mxu0
    %v386 = vadd.f32 %v96, %v385
    %v387 = vpop.f32.mrf.mxu0
    %v388 = vpop.f32.mrf.mxu0
    %v389 = vadd.f32 %v96, %v388
    %v390 = vpop.f32.mrf.mxu0
    %391 = vmatprep.mubr.bf16.mxu0 0
    %392 = vmatmul.mubr.bf16.gmra.mxu0 %v237
    %v393 = vpop.f32.mrf.mxu0
    %v394 = vadd.f32 %v96, %v393
    %v395 = vpop.f32.mrf.mxu0
    %v396 = vpop.f32.mrf.mxu0
    %v397 = vadd.f32 %v96, %v396
    %v398 = vpop.f32.mrf.mxu0
    %399 = vdwg.mxu0
    %v400 = vmax.f32 %v274, 0.0
    %v401 = vmax.f32 %v277, 0.0
    %v402 = vmax.f32 %v282, 0.0
    %v403 = vmax.f32 %v285, 0.0
    %v404 = vmax.f32 %v290, 0.0
    %v405 = vmax.f32 %v293, 0.0
    %v406 = vmax.f32 %v298, 0.0
    %v407 = vmax.f32 %v301, 0.0
    %v408 = vmax.f32 %v306, 0.0
    %v409 = vmax.f32 %v309, 0.0
    %v410 = vmax.f32 %v314, 0.0
    %v411 = vmax.f32 %v317, 0.0
    %v412 = vmax.f32 %v322, 0.0
    %v413 = vmax.f32 %v325, 0.0
    %v414 = vmax.f32 %v330, 0.0
    %v415 = vmax.f32 %v333, 0.0
    %v416 = vmax.f32 %v338, 0.0
    %v417 = vmax.f32 %v341, 0.0
    %v418 = vmax.f32 %v346, 0.0
    %v419 = vmax.f32 %v349, 0.0
    %v420 = vmax.f32 %v354, 0.0
    %v421 = vmax.f32 %v357, 0.0
    %v422 = vmax.f32 %v362, 0.0
    %v423 = vmax.f32 %v365, 0.0
    %v424 = vmax.f32 %v370, 0.0
    %v425 = vmax.f32 %v373, 0.0
    %v426 = vmax.f32 %v378, 0.0
    %v427 = vmax.f32 %v381, 0.0
    %v428 = vmax.f32 %v386, 0.0
    %v429 = vmax.f32 %v389, 0.0
    %v430 = vmax.f32 %v394, 0.0
    %v431 = vmax.f32 %v397, 0.0
    %v432 = vld [vmem:[%s3] sm:$0xff]
    %v434 = vcombine.high %v432, %v432
    %436 = vmatprep.subr.mxu0 0.0
    %437 = vmatpush1.msra.mxu0 %v415
    %438 = vmatprep.subr.mxu0 0.0
    %439 = vmatpush1.msra.mxu0 %v414
    %440 = vmatprep.subr.mxu0 0.0
    %441 = vmatpush1.msra.mxu0 %v413
    %442 = vmatprep.subr.mxu0 0.0
    %443 = vmatpush1.msra.mxu0 %v412
    %444 = vmatprep.subr.mxu0 0.0
    %445 = vmatpush1.msra.mxu0 %v411
    %446 = vmatprep.subr.mxu0 0.0
    %447 = vmatpush1.msra.mxu0 %v410
    %448 = vmatprep.subr.mxu0 0.0
    %449 = vmatpush1.msra.mxu0 %v409
    %450 = vmatprep.subr.mxu0 0.0
    %451 = vmatpush1.msra.mxu0 %v408
    %452 = vmatprep.subr.mxu0 0.0
    %453 = vmatpush1.msra.mxu0 %v407
    %454 = vmatprep.subr.mxu0 0.0
    %455 = vmatpush1.msra.mxu0 %v406
    %456 = vmatprep.subr.mxu0 0.0
    %457 = vmatpush1.msra.mxu0 %v405
    %458 = vmatprep.subr.mxu0 0.0
    %459 = vmatpush1.msra.mxu0 %v404
    %460 = vmatprep.subr.mxu0 0.0
    %461 = vmatpush1.msra.mxu0 %v403
    %462 = vmatprep.subr.mxu0 0.0
    %463 = vmatpush1.msra.mxu0 %v402
    %464 = vmatprep.subr.mxu0 0.0
    %465 = vmatpush1.msra.mxu0 %v401
    %466 = vmatprep.subr.mxu0 0.0
    %467 = vmatpush1.msra.mxu0 %v400
    %468 = vmatprep.subr.mxu0 0.0
    %469 = vmatpush2.msra.mxu0 %v431
    %470 = vmatprep.subr.mxu0 0.0
    %471 = vmatpush2.msra.mxu0 %v430
    %472 = vmatprep.subr.mxu0 0.0
    %473 = vmatpush2.msra.mxu0 %v429
    %474 = vmatprep.subr.mxu0 0.0
    %475 = vmatpush2.msra.mxu0 %v428
    %476 = vmatprep.subr.mxu0 0.0
    %477 = vmatpush2.msra.mxu0 %v427
    %478 = vmatprep.subr.mxu0 0.0
    %479 = vmatpush2.msra.mxu0 %v426
    %480 = vmatprep.subr.mxu0 0.0
    %481 = vmatpush2.msra.mxu0 %v425
    %482 = vmatprep.subr.mxu0 0.0
    %483 = vmatpush2.msra.mxu0 %v424
    %484 = vmatprep.subr.mxu0 0.0
    %485 = vmatpush2.msra.mxu0 %v423
    %486 = vmatprep.subr.mxu0 0.0
    %487 = vmatpush2.msra.mxu0 %v422
    %488 = vmatprep.subr.mxu0 0.0
    %489 = vmatpush2.msra.mxu0 %v421
    %490 = vmatprep.subr.mxu0 0.0
    %491 = vmatpush2.msra.mxu0 %v420
    %492 = vmatprep.subr.mxu0 0.0
    %493 = vmatpush2.msra.mxu0 %v419
    %494 = vmatprep.subr.mxu0 0.0
    %495 = vmatpush2.msra.mxu0 %v418
    %496 = vmatprep.subr.mxu0 0.0
    %497 = vmatpush2.msra.mxu0 %v417
    %498 = vmatprep.subr.mxu0 0.0
    %499 = vmatpush2.msra.mxu0 %v416
    %500 = vmatprep.mubr.f32.mxu0 %v434
    %501 = vmatmul.mubr.f32.gmra.mxu0 %v432
    %v502 = vpop.f32.mrf.mxu0
    %v503 = vadd.f32 0.0, %v502
    %v504 = vpop.f32.mrf.mxu0
    %505 = vdwg.mxu0
    %v506 = vld [vmem:[%s4] sm:$0xf]
    %v507 = vld [vmem:[%s4 + $0x4] sm:$0xf]
    %v508 = vld [vmem:[%s4 + $0x8] sm:$0xf]
    %v509 = vld [vmem:[%s4 + $0xc] sm:$0xf]
    %v510 = vld [vmem:[%s5] sm:$0x1]
    %v511 = vld [vmem:[%s6] sm:$0x1]
    %v512 = vld [vmem:[%s7] sm:$0x1]
    %v513 = vld [vmem:[%s8] sm:$0xf]
    %v514 = vld [vmem:[%s8 + $0x4] sm:$0xf]
    %v515 = vld [vmem:[%s8 + $0x8] sm:$0xf]
    %v516 = vld [vmem:[%s8 + $0xc] sm:$0xf]
    %v517 = vld [vmem:[%s8 + $0x10] sm:$0xf]
    %v518 = vld [vmem:[%s8 + $0x14] sm:$0xf]
    %v519 = vld [vmem:[%s8 + $0x18] sm:$0xf]
    %v520 = vld [vmem:[%s8 + $0x1c] sm:$0xf]
    %v521 = vld [vmem:[%s8 + $0x20] sm:$0xf]
    %v522 = vld [vmem:[%s8 + $0x24] sm:$0xf]
    %v523 = vld [vmem:[%s8 + $0x28] sm:$0xf]
    %v524 = vld [vmem:[%s8 + $0x2c] sm:$0xf]
    %v525 = vld [vmem:[%s8 + $0x30] sm:$0xf]
    %v526 = vld [vmem:[%s8 + $0x34] sm:$0xf]
    %v527 = vld [vmem:[%s8 + $0x38] sm:$0xf]
    %v528 = vld [vmem:[%s8 + $0x3c] sm:$0xf]
    %v529 = vld [vmem:[%s9] sm:$0x1]
    %v530 = vpack.c.bf16 %v503, %v503
    %v532 = vlaneseq
    %v533 = vshrl.u32 %v532, 7
    %v534 = vsub.s32 0, %v533
    %v535 = vrot.slane %v510, %v534
    %v541 = vunpack.c.l.b16 %v506
    %v542 = vunpack.c.l.b16 %v507
    %v543 = vunpack.c.l.b16 %v508
    %v544 = vunpack.c.l.b16 %v509
    %v545 = vpack.c.b16 %v542, %v541
    %v546 = vpack.c.b16 %v544, %v543
    %v550 = vsel %vm190, %v530, 0
    %552 = vmatprep.subr.bf16.mxu0 0
    %553 = vmatpush1.bf16.msra.mxu0 0
    %554 = vmatprep.subr.bf16.mxu0 0
    %555 = vmatpush1.bf16.msra.mxu0 0
    %556 = vmatprep.subr.bf16.mxu0 0
    %557 = vmatpush1.bf16.msra.mxu0 0
    %558 = vmatprep.subr.bf16.mxu0 0
    %559 = vmatpush1.bf16.msra.mxu0 0
    %560 = vmatprep.subr.bf16.mxu0 0
    %561 = vmatpush1.bf16.msra.mxu0 0
    %562 = vmatprep.subr.bf16.mxu0 0
    %563 = vmatpush1.bf16.msra.mxu0 0
    %564 = vmatprep.subr.bf16.mxu0 0
    %565 = vmatpush1.bf16.msra.mxu0 %v546
    %566 = vmatprep.subr.bf16.mxu0 0
    %567 = vmatpush1.bf16.msra.mxu0 %v545
    %568 = vmatprep.subr.bf16.mxu0 0
    %569 = vmatpush2.bf16.msra.mxu0 0
    %570 = vmatprep.subr.bf16.mxu0 0
    %571 = vmatpush2.bf16.msra.mxu0 0
    %572 = vmatprep.subr.bf16.mxu0 0
    %573 = vmatpush2.bf16.msra.mxu0 0
    %574 = vmatprep.subr.bf16.mxu0 0
    %575 = vmatpush2.bf16.msra.mxu0 0
    %576 = vmatprep.subr.bf16.mxu0 0
    %577 = vmatpush2.bf16.msra.mxu0 0
    %578 = vmatprep.subr.bf16.mxu0 0
    %579 = vmatpush2.bf16.msra.mxu0 0
    %580 = vmatprep.subr.bf16.mxu0 0
    %581 = vmatpush2.bf16.msra.mxu0 0
    %582 = vmatprep.subr.bf16.mxu0 0
    %583 = vmatpush2.bf16.msra.mxu0 0
    %584 = vmatprep.mubr.bf16.mxu0 0
    %585 = vmatmul.mubr.bf16.gmra.mxu0 %v550
    %v586 = vpop.f32.mrf.mxu0
    %v587 = vadd.f32 %v535, %v586
    %v588 = vpop.f32.mrf.mxu0
    %v589 = vpop.f32.mrf.mxu0
    %v590 = vpop.f32.mrf.mxu0
    %591 = vdwg.mxu0
    %vm592 = vcmask 1041408
    %v593 = vsel %vm592, %v587, 0.0
    %v594 = vrot.slane %v593, 4
    %v595 = vadd.f32 %v593, %v594
    %v596 = vrot.slane %v595, 2
    %v597 = vadd.f32 %v595, %v596
    %v598 = vrot.slane %v597, 1
    %v599 = vadd.f32 %v597, %v598
    %v600 = vrcp.pop 2.0
    %v601 = vmul.f32 %v599, %v600
    %v603 = vrot.slane %v587, 2
    %v605 = vsel %vm592, %v603, 0.0
    %v606 = vrot.slane %v605, 4
    %v607 = vadd.f32 %v605, %v606
    %v608 = vrot.slane %v607, 2
    %v609 = vadd.f32 %v607, %v608
    %v610 = vrot.slane %v609, 1
    %v611 = vadd.f32 %v609, %v610
    %v612 = vmul.f32 %v611, %v600
    %v613 = vsub.f32 %v587, %v601
    %v614 = vsub.f32 %v587, %v612
    %v615 = vmul.f32 %v613, %v613
    %v616 = vsel %vm592, %v615, 0.0
    %v617 = vrot.slane %v616, 4
    %v618 = vadd.f32 %v616, %v617
    %v619 = vrot.slane %v618, 2
    %v620 = vadd.f32 %v618, %v619
    %v621 = vrot.slane %v620, 1
    %v622 = vadd.f32 %v620, %v621
    %v623 = vmul.f32 %v622, %v600
    %v624 = vmul.f32 %v614, %v614
    %v626 = vrot.slane %v624, 2
    %v628 = vsel %vm592, %v626, 0.0
    %v629 = vrot.slane %v628, 4
    %v630 = vadd.f32 %v628, %v629
    %v631 = vrot.slane %v630, 2
    %v632 = vadd.f32 %v630, %v631
    %v633 = vrot.slane %v632, 1
    %v634 = vadd.f32 %v632, %v633
    %v635 = vmul.f32 %v634, %v600
    %v636 = vadd.f32 %v623, 1e-05
    %v637 = vrsqrt.pop %v636
    %v638 = vmul.f32 %v613, %v637
    %v639 = vadd.f32 %v635, 1e-05
    %v640 = vrsqrt.pop %v639
    %v641 = vmul.f32 %v614, %v640
    %v642 = vsel %vm592, %v638, %v641
    %v644 = vlaneseq
    %v645 = vshrl.u32 %v644, 7
    %v646 = vsub.s32 0, %v645
    %v647 = vrot.slane %v511, %v646
    %v649 = vmul.f32 %v642, %v647
    %v651 = vlaneseq
    %v652 = vshrl.u32 %v651, 7
    %v653 = vsub.s32 0, %v652
    %v654 = vrot.slane %v512, %v653
    %v656 = vadd.f32 %v649, %v654
    %v657 = vmax.f32 %v656, 0.0
    %v658 = vpack.c.bf16 %v657, %v657
    %v660 = vlaneseq
    %v661 = vshrl.u32 %v660, 7
    %v662 = vsub.s32 0, %v661
    %v663 = vrot.slane %v529, %v662
    %v681 = vunpack.c.l.b16 %v513
    %v682 = vunpack.c.l.b16 %v514
    %v683 = vunpack.c.l.b16 %v515
    %v684 = vunpack.c.l.b16 %v516
    %v685 = vunpack.c.l.b16 %v517
    %v686 = vunpack.c.l.b16 %v518
    %v687 = vunpack.c.l.b16 %v519
    %v688 = vunpack.c.l.b16 %v520
    %v689 = vunpack.c.l.b16 %v521
    %v690 = vunpack.c.l.b16 %v522
    %v691 = vunpack.c.l.b16 %v523
    %v692 = vunpack.c.l.b16 %v524
    %v693 = vunpack.c.l.b16 %v525
    %v694 = vunpack.c.l.b16 %v526
    %v695 = vunpack.c.l.b16 %v527
    %v696 = vunpack.c.l.b16 %v528
    %v697 = vpack.c.b16 %v682, %v681
    %v698 = vpack.c.b16 %v684, %v683
    %v699 = vpack.c.b16 %v686, %v685
    %v700 = vpack.c.b16 %v688, %v687
    %v701 = vpack.c.b16 %v690, %v689
    %v702 = vpack.c.b16 %v692, %v691
    %v703 = vpack.c.b16 %v694, %v693
    %v704 = vpack.c.b16 %v696, %v695
    %713 = vmatprep.subr.bf16.mxu0 0
    %714 = vmatpush1.bf16.msra.mxu0 %v704
    %715 = vmatprep.subr.bf16.mxu0 0
    %716 = vmatpush1.bf16.msra.mxu0 %v703
    %717 = vmatprep.subr.bf16.mxu0 0
    %718 = vmatpush1.bf16.msra.mxu0 %v702
    %719 = vmatprep.subr.bf16.mxu0 0
    %720 = vmatpush1.bf16.msra.mxu0 %v701
    %721 = vmatprep.subr.bf16.mxu0 0
    %722 = vmatpush1.bf16.msra.mxu0 %v700
    %723 = vmatprep.subr.bf16.mxu0 0
    %724 = vmatpush1.bf16.msra.mxu0 %v699
    %725 = vmatprep.subr.bf16.mxu0 0
    %726 = vmatpush1.bf16.msra.mxu0 %v698
    %727 = vmatprep.subr.bf16.mxu0 0
    %728 = vmatpush1.bf16.msra.mxu0 %v697
    %729 = vmatprep.subr.bf16.mxu0 0
    %730 = vmatpush2.bf16.msra.mxu0 0
    %731 = vmatprep.subr.bf16.mxu0 0
    %732 = vmatpush2.bf16.msra.mxu0 0
    %733 = vmatprep.subr.bf16.mxu0 0
    %734 = vmatpush2.bf16.msra.mxu0 0
    %735 = vmatprep.subr.bf16.mxu0 0
    %736 = vmatpush2.bf16.msra.mxu0 0
    %737 = vmatprep.subr.bf16.mxu0 0
    %738 = vmatpush2.bf16.msra.mxu0 0
    %739 = vmatprep.subr.bf16.mxu0 0
    %740 = vmatpush2.bf16.msra.mxu0 0
    %741 = vmatprep.subr.bf16.mxu0 0
    %742 = vmatpush2.bf16.msra.mxu0 0
    %743 = vmatprep.subr.bf16.mxu0 0
    %744 = vmatpush2.bf16.msra.mxu0 0
    %745 = vmatprep.mubr.bf16.mxu0 0
    %746 = vmatmul.mubr.bf16.gmra.mxu0 %v658
    %v747 = vpop.f32.mrf.mxu0
    %v748 = vadd.f32 %v663, %v747
    %v749 = vpop.f32.mrf.mxu0
    %v750 = vpop.f32.mrf.mxu0
    %v751 = vpop.f32.mrf.mxu0
    %752 = vdwg.mxu0
    %v753 = vld [vmem:[%s10] sm:$0xf]
    %v754 = vld [vmem:[%s10 + $0x4] sm:$0xf]
    %v755 = vld [vmem:[%s10 + $0x8] sm:$0xf]
    %v756 = vld [vmem:[%s10 + $0xc] sm:$0xf]
    %v757 = vld [vmem:[%s11] sm:$0x1]
    %v758 = vld [vmem:[%s12] sm:$0x1]
    %v759 = vld [vmem:[%s13] sm:$0x1]
    %v760 = vld [vmem:[%s14] sm:$0xf]
    %v761 = vld [vmem:[%s14 + $0x4] sm:$0xf]
    %v762 = vld [vmem:[%s14 + $0x8] sm:$0xf]
    %v763 = vld [vmem:[%s14 + $0xc] sm:$0xf]
    %v764 = vld [vmem:[%s14 + $0x10] sm:$0xf]
    %v765 = vld [vmem:[%s14 + $0x14] sm:$0xf]
    %v766 = vld [vmem:[%s14 + $0x18] sm:$0xf]
    %v767 = vld [vmem:[%s14 + $0x1c] sm:$0xf]
    %v768 = vld [vmem:[%s14 + $0x20] sm:$0xf]
    %v769 = vld [vmem:[%s14 + $0x24] sm:$0xf]
    %v770 = vld [vmem:[%s14 + $0x28] sm:$0xf]
    %v771 = vld [vmem:[%s14 + $0x2c] sm:$0xf]
    %v772 = vld [vmem:[%s14 + $0x30] sm:$0xf]
    %v773 = vld [vmem:[%s14 + $0x34] sm:$0xf]
    %v774 = vld [vmem:[%s14 + $0x38] sm:$0xf]
    %v775 = vld [vmem:[%s14 + $0x3c] sm:$0xf]
    %v776 = vld [vmem:[%s15] sm:$0x1]
    %v777 = vpack.c.bf16 %v748, %v748
    %v779 = vlaneseq
    %v780 = vshrl.u32 %v779, 7
    %v781 = vsub.s32 0, %v780
    %v782 = vrot.slane %v757, %v781
    %v788 = vunpack.c.l.b16 %v753
    %v789 = vunpack.c.l.b16 %v754
    %v790 = vunpack.c.l.b16 %v755
    %v791 = vunpack.c.l.b16 %v756
    %v792 = vpack.c.b16 %v789, %v788
    %v793 = vpack.c.b16 %v791, %v790
    %v797 = vsel %vm190, %v777, 0
    %799 = vmatprep.subr.bf16.mxu0 0
    %800 = vmatpush1.bf16.msra.mxu0 0
    %801 = vmatprep.subr.bf16.mxu0 0
    %802 = vmatpush1.bf16.msra.mxu0 0
    %803 = vmatprep.subr.bf16.mxu0 0
    %804 = vmatpush1.bf16.msra.mxu0 0
    %805 = vmatprep.subr.bf16.mxu0 0
    %806 = vmatpush1.bf16.msra.mxu0 0
    %807 = vmatprep.subr.bf16.mxu0 0
    %808 = vmatpush1.bf16.msra.mxu0 0
    %809 = vmatprep.subr.bf16.mxu0 0
    %810 = vmatpush1.bf16.msra.mxu0 0
    %811 = vmatprep.subr.bf16.mxu0 0
    %812 = vmatpush1.bf16.msra.mxu0 %v793
    %813 = vmatprep.subr.bf16.mxu0 0
    %814 = vmatpush1.bf16.msra.mxu0 %v792
    %815 = vmatprep.subr.bf16.mxu0 0
    %816 = vmatpush2.bf16.msra.mxu0 0
    %817 = vmatprep.subr.bf16.mxu0 0
    %818 = vmatpush2.bf16.msra.mxu0 0
    %819 = vmatprep.subr.bf16.mxu0 0
    %820 = vmatpush2.bf16.msra.mxu0 0
    %821 = vmatprep.subr.bf16.mxu0 0
    %822 = vmatpush2.bf16.msra.mxu0 0
    %823 = vmatprep.subr.bf16.mxu0 0
    %824 = vmatpush2.bf16.msra.mxu0 0
    %825 = vmatprep.subr.bf16.mxu0 0
    %826 = vmatpush2.bf16.msra.mxu0 0
    %827 = vmatprep.subr.bf16.mxu0 0
    %828 = vmatpush2.bf16.msra.mxu0 0
    %829 = vmatprep.subr.bf16.mxu0 0
    %830 = vmatpush2.bf16.msra.mxu0 0
    %831 = vmatprep.mubr.bf16.mxu0 0
    %832 = vmatmul.mubr.bf16.gmra.mxu0 %v797
    %v833 = vpop.f32.mrf.mxu0
    %v834 = vadd.f32 %v782, %v833
    %v835 = vpop.f32.mrf.mxu0
    %v836 = vpop.f32.mrf.mxu0
    %v837 = vpop.f32.mrf.mxu0
    %838 = vdwg.mxu0
    %v839 = vsel %vm592, %v834, 0.0
    %v840 = vrot.slane %v839, 4
    %v841 = vadd.f32 %v839, %v840
    %v842 = vrot.slane %v841, 2
    %v843 = vadd.f32 %v841, %v842
    %v844 = vrot.slane %v843, 1
    %v845 = vadd.f32 %v843, %v844
    %v846 = vmul.f32 %v845, %v600
    %v848 = vrot.slane %v834, 2
    %v850 = vsel %vm592, %v848, 0.0
    %v851 = vrot.slane %v850, 4
    %v852 = vadd.f32 %v850, %v851
    %v853 = vrot.slane %v852, 2
    %v854 = vadd.f32 %v852, %v853
    %v855 = vrot.slane %v854, 1
    %v856 = vadd.f32 %v854, %v855
    %v857 = vmul.f32 %v856, %v600
    %v858 = vsub.f32 %v834, %v846
    %v859 = vsub.f32 %v834, %v857
    %v860 = vmul.f32 %v858, %v858
    %v861 = vsel %vm592, %v860, 0.0
    %v862 = vrot.slane %v861, 4
    %v863 = vadd.f32 %v861, %v862
    %v864 = vrot.slane %v863, 2
    %v865 = vadd.f32 %v863, %v864
    %v866 = vrot.slane %v865, 1
    %v867 = vadd.f32 %v865, %v866
    %v868 = vmul.f32 %v867, %v600
    %v869 = vmul.f32 %v859, %v859
    %v871 = vrot.slane %v869, 2
    %v873 = vsel %vm592, %v871, 0.0
    %v874 = vrot.slane %v873, 4
    %v875 = vadd.f32 %v873, %v874
    %v876 = vrot.slane %v875, 2
    %v877 = vadd.f32 %v875, %v876
    %v878 = vrot.slane %v877, 1
    %v879 = vadd.f32 %v877, %v878
    %v880 = vmul.f32 %v879, %v600
    %v881 = vadd.f32 %v868, 1e-05
    %v882 = vrsqrt.pop %v881
    %v883 = vmul.f32 %v858, %v882
    %v884 = vadd.f32 %v880, 1e-05
    %v885 = vrsqrt.pop %v884
    %v886 = vmul.f32 %v859, %v885
    %v887 = vsel %vm592, %v883, %v886
    %v889 = vlaneseq
    %v890 = vshrl.u32 %v889, 7
    %v891 = vsub.s32 0, %v890
    %v892 = vrot.slane %v758, %v891
    %v894 = vmul.f32 %v887, %v892
    %v896 = vlaneseq
    %v897 = vshrl.u32 %v896, 7
    %v898 = vsub.s32 0, %v897
    %v899 = vrot.slane %v759, %v898
    %v901 = vadd.f32 %v894, %v899
    %v902 = vmax.f32 %v901, 0.0
    %v903 = vpack.c.bf16 %v902, %v902
    %v905 = vlaneseq
    %v906 = vshrl.u32 %v905, 7
    %v907 = vsub.s32 0, %v906
    %v908 = vrot.slane %v776, %v907
    %v926 = vunpack.c.l.b16 %v760
    %v927 = vunpack.c.l.b16 %v761
    %v928 = vunpack.c.l.b16 %v762
    %v929 = vunpack.c.l.b16 %v763
    %v930 = vunpack.c.l.b16 %v764
    %v931 = vunpack.c.l.b16 %v765
    %v932 = vunpack.c.l.b16 %v766
    %v933 = vunpack.c.l.b16 %v767
    %v934 = vunpack.c.l.b16 %v768
    %v935 = vunpack.c.l.b16 %v769
    %v936 = vunpack.c.l.b16 %v770
    %v937 = vunpack.c.l.b16 %v771
    %v938 = vunpack.c.l.b16 %v772
    %v939 = vunpack.c.l.b16 %v773
    %v940 = vunpack.c.l.b16 %v774
    %v941 = vunpack.c.l.b16 %v775
    %v942 = vpack.c.b16 %v927, %v926
    %v943 = vpack.c.b16 %v929, %v928
    %v944 = vpack.c.b16 %v931, %v930
    %v945 = vpack.c.b16 %v933, %v932
    %v946 = vpack.c.b16 %v935, %v934
    %v947 = vpack.c.b16 %v937, %v936
    %v948 = vpack.c.b16 %v939, %v938
    %v949 = vpack.c.b16 %v941, %v940
    %958 = vmatprep.subr.bf16.mxu0 0
    %959 = vmatpush1.bf16.msra.mxu0 %v949
    %960 = vmatprep.subr.bf16.mxu0 0
    %961 = vmatpush1.bf16.msra.mxu0 %v948
    %962 = vmatprep.subr.bf16.mxu0 0
    %963 = vmatpush1.bf16.msra.mxu0 %v947
    %964 = vmatprep.subr.bf16.mxu0 0
    %965 = vmatpush1.bf16.msra.mxu0 %v946
    %966 = vmatprep.subr.bf16.mxu0 0
    %967 = vmatpush1.bf16.msra.mxu0 %v945
    %968 = vmatprep.subr.bf16.mxu0 0
    %969 = vmatpush1.bf16.msra.mxu0 %v944
    %970 = vmatprep.subr.bf16.mxu0 0
    %971 = vmatpush1.bf16.msra.mxu0 %v943
    %972 = vmatprep.subr.bf16.mxu0 0
    %973 = vmatpush1.bf16.msra.mxu0 %v942
    %974 = vmatprep.subr.bf16.mxu0 0
    %975 = vmatpush2.bf16.msra.mxu0 0
    %976 = vmatprep.subr.bf16.mxu0 0
    %977 = vmatpush2.bf16.msra.mxu0 0
    %978 = vmatprep.subr.bf16.mxu0 0
    %979 = vmatpush2.bf16.msra.mxu0 0
    %980 = vmatprep.subr.bf16.mxu0 0
    %981 = vmatpush2.bf16.msra.mxu0 0
    %982 = vmatprep.subr.bf16.mxu0 0
    %983 = vmatpush2.bf16.msra.mxu0 0
    %984 = vmatprep.subr.bf16.mxu0 0
    %985 = vmatpush2.bf16.msra.mxu0 0
    %986 = vmatprep.subr.bf16.mxu0 0
    %987 = vmatpush2.bf16.msra.mxu0 0
    %988 = vmatprep.subr.bf16.mxu0 0
    %989 = vmatpush2.bf16.msra.mxu0 0
    %990 = vmatprep.mubr.bf16.mxu0 0
    %991 = vmatmul.mubr.bf16.gmra.mxu0 %v903
    %v992 = vpop.f32.mrf.mxu0
    %v993 = vadd.f32 %v908, %v992
    %v994 = vpop.f32.mrf.mxu0
    %v995 = vpop.f32.mrf.mxu0
    %v996 = vpop.f32.mrf.mxu0
    %997 = vdwg.mxu0
    %v998 = vmul.f32 %v993, %v993
    %vm999 = vcmask 257024
    %v1000 = vsel %vm999, %v998, 0.0
    %1001 = vadd.xlane.f32.xlu0 %v1000
    %v1002 = vpop.xlane.xlu0 %1001
    %v1003 = vmax.f32 %v1002, 1e-24
    %v1004 = vrsqrt.pop %v1003
    %v1005 = vmul.f32 %v993, %v1004
    %v1006 = vmul.f32 %v748, %v748
    %v1007 = vsel %vm999, %v1006, 0.0
    %1008 = vadd.xlane.f32.xlu0 %v1007
    %v1009 = vpop.xlane.xlu0 %1008
    %v1010 = vmax.f32 %v1009, 1e-24
    %v1011 = vrsqrt.pop %v1010
    %v1012 = vmul.f32 %v748, %v1011
    %v1014 = vrot.slane %v1012, 2
    %v1016 = vmul.f32 %v1005, %v1014
    %vm1017 = vcmask 254976
    %v1018 = vsel %vm1017, %v1016, 0.0
    %1019 = vadd.xlane.f32.xlu0 %v1018
    %v1020 = vpop.xlane.xlu0 %1019
    %v1021 = vmul.f32 %v1020, 2.0
    %v1022 = vsub.f32 2.0, %v1021
    %v1023 = vrot.slane %v1012, 6
    %v1025 = vmul.f32 %v1005, %v1023
    %vm1026 = vcmask 257026
    %v1027 = vsel %vm1026, %v1025, 0.0
    %1028 = vadd.xlane.f32.xlu0 %v1027
    %v1029 = vpop.xlane.xlu0 %1028
    %v1030 = vmul.f32 %v1029, 2.0
    %v1031 = vsub.f32 2.0, %v1030
    %v1033 = vrot.slane %v1031, 2
    %v1035 = vadd.f32 %v1022, %v1033
    %vm1036 = vcmask 1024
    %v1037 = vsel %vm1036, %v1035, 0.0
    %1038 = vadd.xlane.f32.xlu0 %v1037
    %v1039 = vpop.xlane.xlu0 %1038
    %v1040 = vrot.slane %v1039, 4
    %v1041 = vadd.f32 %v1039, %v1040
    %v1042 = vrot.slane %v1041, 2
    %v1043 = vadd.f32 %v1041, %v1042
    %v1044 = vrot.slane %v1043, 1
    %v1045 = vadd.f32 %v1043, %v1044
    %s1046 = vtos %v1045
    %v1047 = vstv %s1046
    %v1048 = vmul.f32 %v1047, %v600
    %vm1049 = vcmask 0
    %1050 = vst.msk [vmem:[#allocation2] sm:$0x1] %vm1049, %v1048
    // Predicated region
    $region66: #{byol_forward.1} parent=1 // pred_check
      _
    $region67: #{byol_forward.1} parent=1 // pred_check_branch
      %1052 = sbr.rel (0) target = $region69
    $region68: #{byol_forward.1} parent=1 // pred_region
      %s1054 = ssub.s32 16, 16
      %1055 = vsyncadd [#allocation3], %s1054
      %s1057 = sshll.u32 [#allocation2], 4
      %s1058 = int_to_ptr.vmem [resolvable:$true] %s1057
      %1060 = dma.vmem_to_hbm [thread:$0]  %s1058, 16, %s16, [#allocation3]
    $region69: #{byol_forward.1} parent=1 // pred_fallthru
      _
    // Predicated region
    $region70: #{byol_forward.1} parent=1 // pred_check
      _
    $region71: #{byol_forward.1} parent=1 // pred_check_branch
      %1062 = sbr.rel (0) target = $region73
    $region72: #{byol_forward.1} parent=1 // pred_region
      %1063 = dma.done [#allocation3], 16
    $region73: #{byol_forward.1} parent=1 // pred_fallthru
      _
    %1064 = vsyncpa [#allocation3], 1

</llo_original>
